<compile_context>
chip_gen: v5e
topology: v5e:2x2
jax: 0.10.0
libtpu: 0.0.40
codegen_flags: <defaults>
</compile_context>

<pallas_src>
import jax
import jax.numpy as jnp
from jax.experimental import pallas as pl
from jax.experimental.pallas import tpu as pltpu


def _permute_kernel(x_ref, yflat_ref, xo_ref, yo_ref):
    # x: (M, N) -> (N, M): one whole-tile XLU transpose.
    xo_ref[...] = x_ref[...].T
    # y (flattened to (A, B*C)): -> (B*C, A): one lane-dense-input XLU transpose.
    yo_ref[...] = yflat_ref[...].T


def model_forward(x, y, z, *, use_pallas=True):
    M, N = x.shape
    A, B, C = y.shape

    if not use_pallas:
        # For KiB-scale tensors the pallas_call fixed cost (~0.35 us+, HBM->VMEM
        # ->HBM round trip) dominates; let XLA fold the permutes away instead.
        return jnp.transpose(x, (1, 0)), jnp.transpose(y, (1, 2, 0)), z

    # Free view change for a contiguous row-major array.
    y_flat = y.reshape(A, B * C)

    bytes_accessed = 2 * (x.size * x.dtype.itemsize) + 2 * (y.size * y.dtype.itemsize)

    vmem_spec = pl.BlockSpec(memory_space=pltpu.MemorySpace.VMEM)
    xo, yo_flat = pl.pallas_call(
        _permute_kernel,
        out_shape=(
            jax.ShapeDtypeStruct((N, M), x.dtype),       # x.permute(1,0)
            jax.ShapeDtypeStruct((B * C, A), y.dtype),   # flat view of y.permute(1,2,0)
        ),
        in_specs=[vmem_spec, vmem_spec],
        out_specs=(vmem_spec, vmem_spec),
        cost_estimate=pl.CostEstimate(
            flops=0, transcendentals=0, bytes_accessed=bytes_accessed
        ),
    )(x, y_flat)

    # (B*C, A) -> (B, C, A) is a free contiguous reshape of the HBM result.
    yo = yo_flat.reshape(B, C, A)

    # z: net permutation is the identity -> pass through, zero cost.
    zo = z
    return xo, yo, zo


if __name__ == "__main__":
    key = jax.random.PRNGKey(0)
    kx, ky, kz = jax.random.split(key, 3)

    # Small shapes consistent with the module's 2D / 3D / 4D inputs.
    x = jax.random.normal(kx, (16, 24), dtype=jnp.float32)
    y = jax.random.normal(ky, (4, 8, 16), dtype=jnp.float32)
    z = jax.random.normal(kz, (2, 4, 8, 16), dtype=jnp.float32)

    xo, yo, zo = jax.block_until_ready(model_forward(x, y, z))

    # Reference check (plain JAX, mirrors the chained torch.permute calls).
    x_ref = jnp.transpose(jnp.transpose(x, (1, 0)), (0, 1))
    y_ref = jnp.transpose(jnp.transpose(y, (2, 1, 0)), (1, 0, 2))
    z_ref = jnp.transpose(jnp.transpose(z, (1, 3, 0, 2)), (2, 0, 3, 1))

    assert xo.shape == x_ref.shape and jnp.allclose(xo, x_ref)
    assert yo.shape == y_ref.shape and jnp.allclose(yo, y_ref)
    assert zo.shape == z_ref.shape and jnp.allclose(zo, z_ref)

    print("KERNEL_OK")
</pallas_src>

<mosaic_0001>
module attributes {stable_mosaic.version = 11 : i64} {
  func.func @_permute_kernel(%arg0: memref<16x24xf32, #tpu.memory_space<vmem>>, %arg1: memref<4x128xf32, #tpu.memory_space<vmem>>, %arg2: memref<24x16xf32, #tpu.memory_space<vmem>>, %arg3: memref<128x4xf32, #tpu.memory_space<vmem>>) attributes {dimension_semantics = [], scalar_prefetch = 0 : i64, scratch_operands = 0 : i64, tpu.core_type = #tpu.core_type<tc>} {
    %c0 = arith.constant 0 : index
    %c0_0 = arith.constant 0 : index
    %0 = vector.load %arg0[%c0, %c0_0] : memref<16x24xf32, #tpu.memory_space<vmem>>, vector<16x24xf32>
    %1 = tpu.transpose %0, [1, 0] : vector<16x24xf32> -> vector<24x16xf32>
    %c0_1 = arith.constant 0 : index
    %c0_2 = arith.constant 0 : index
    %2 = vector.load %arg2[%c0_1, %c0_2] : memref<24x16xf32, #tpu.memory_space<vmem>>, vector<24x16xf32>
    tpu.vector_store %arg2[%c0_1, %c0_2], %1 {strides = array<i32>} : memref<24x16xf32, #tpu.memory_space<vmem>>, vector<24x16xf32>,
    %c0_3 = arith.constant 0 : index
    %c0_4 = arith.constant 0 : index
    %3 = vector.load %arg1[%c0_3, %c0_4] : memref<4x128xf32, #tpu.memory_space<vmem>>, vector<4x128xf32>
    %4 = tpu.transpose %3, [1, 0] : vector<4x128xf32> -> vector<128x4xf32>
    %c0_5 = arith.constant 0 : index
    %c0_6 = arith.constant 0 : index
    %5 = vector.load %arg3[%c0_5, %c0_6] : memref<128x4xf32, #tpu.memory_space<vmem>>, vector<128x4xf32>
    tpu.vector_store %arg3[%c0_5, %c0_6], %4 {strides = array<i32>} : memref<128x4xf32, #tpu.memory_space<vmem>>, vector<128x4xf32>,
    return
  }
}

</mosaic_0001>

<llo_original>
// kernel: tpu_custom_call.1
$region0: #{tpu_custom_call.1}
  #allocation0 [shape = 'u32[]', space=smem, size = 0x4, offset = 0x4, fixed_abs, tag = 'smem constant byte address 0x4 - core index']
  #allocation1 [shape = 'u32[72,128]{1,0:T(1,128)}', space=vmem, size = 0x9000, scoped, tag = 'internal scratch']
  %s0 = inlined_call_operand.hbm [shape: f32[16,24], index: 0, kind: input, shape index: {}]
  %s1 = inlined_call_operand.hbm [shape: f32[4,128], index: 1, kind: input, shape index: {}]
  %s2 = inlined_call_operand.vmem [shape: f32[24,16], index: 2, kind: output, shape index: {0}]
  %s3 = inlined_call_operand.vmem [shape: f32[128,4], index: 3, kind: output, shape index: {1}]
  %4 = xla_tuple %s2, %s3
  %s5 = sld [smem:[#allocation0]]
  $region34: #{tpu_custom_call.1} parent=0
    _
  %s7 = ssub.s32 1, %s5
  %s8 = scalar_select 0, %s7, %s5
  $region1: #{tpu_custom_call.1} parent=0
    #allocation2 [shape = 'u8[8192]{0}', space=vmem, size = 0x2000, scoped, tag = 'input window, operand 0, single buffered']
    #allocation3 [shape = 's32[1]{0}', space=sflag, size = 0x4, scoped, tag = 'scoped memory for tpu_custom_call.1']
    #allocation4 [shape = 'u8[2048]{0}', space=vmem, size = 0x800, scoped, tag = 'input window, operand 1, single buffered']
    #allocation5 [shape = 's32[1]{0}', space=sflag, size = 0x4, scoped, tag = 'scoped memory for tpu_custom_call.1']
    %9 = vsyncpa [#allocation3], 0
    %10 = vsyncpa [#allocation5], 0
    // Predicated region
    $region2: #{tpu_custom_call.1} parent=1 // pred_check
      _
    $region3: #{tpu_custom_call.1} parent=1 // pred_check_branch
      %12 = sbr.rel (0) target = $region5
    $region4: #{tpu_custom_call.1} parent=1 // pred_region
      %14 = vsyncadd [#allocation3], 0
      %s15 = sshll.u32 %s0, 4
      %s16 = int_to_ptr.hbm [resolvable:$true] %s15
      %s17 = sshll.u32 [#allocation2], 4
      %s18 = int_to_ptr.vmem [resolvable:$true] %s17
      %23 = dma.hbm_to_vmem [thread:$0]  %s16, 256, %s18, [#allocation3], 128, 128, 8
    $region5: #{tpu_custom_call.1} parent=1 // pred_fallthru
      _
    // Predicated region
    $region6: #{tpu_custom_call.1} parent=1 // pred_check
      _
    $region7: #{tpu_custom_call.1} parent=1 // pred_check_branch
      %25 = sbr.rel (0) target = $region9
    $region8: #{tpu_custom_call.1} parent=1 // pred_region
      %27 = vsyncadd [#allocation5], 0
      %s29 = sshll.u32 %s1, 4
      %s30 = int_to_ptr.hbm [resolvable:$true] %s29
      %s31 = sshll.u32 [#allocation4], 4
      %s32 = int_to_ptr.vmem [resolvable:$true] %s31
      %34 = dma.hbm_to_vmem [thread:$0]  %s30, 64, %s32, [#allocation5]
    $region9: #{tpu_custom_call.1} parent=1 // pred_fallthru
      _
    // Predicated region
    $region10: #{tpu_custom_call.1} parent=1 // pred_check
      _
    $region11: #{tpu_custom_call.1} parent=1 // pred_check_branch
      %36 = sbr.rel (0) target = $region13
    $region12: #{tpu_custom_call.1} parent=1 // pred_region
      %38 = dma.done [#allocation3], 256
    $region13: #{tpu_custom_call.1} parent=1 // pred_fallthru
      _
    // Predicated region
    $region14: #{tpu_custom_call.1} parent=1 // pred_check
      _
    $region15: #{tpu_custom_call.1} parent=1 // pred_check_branch
      %40 = sbr.rel (0) target = $region17
    $region16: #{tpu_custom_call.1} parent=1 // pred_region
      %42 = dma.done [#allocation5], 64
    $region17: #{tpu_custom_call.1} parent=1 // pred_fallthru
      _
    %v43 = vld [vmem:[#allocation2] sm:$0xff]
    %v44 = vld [vmem:[#allocation2 + $0x8] sm:$0xff]
    %45 = vxpose.xlu0.b32.start [1/16] %v43, 128
    %46 = vxpose.xlu0.b32.cont [2/16] %v44, 128
    %47 = vxpose.xlu0.b32.cont [3/16] 0.0, 128
    %48 = vxpose.xlu0.b32.cont [4/16] 0.0, 128
    %49 = vxpose.xlu0.b32.cont [5/16] 0.0, 128
    %50 = vxpose.xlu0.b32.cont [6/16] 0.0, 128
    %51 = vxpose.xlu0.b32.cont [7/16] 0.0, 128
    %52 = vxpose.xlu0.b32.cont [8/16] 0.0, 128
    %53 = vxpose.xlu0.b32.cont [9/16] 0.0, 128
    %54 = vxpose.xlu0.b32.cont [10/16] 0.0, 128
    %55 = vxpose.xlu0.b32.cont [11/16] 0.0, 128
    %56 = vxpose.xlu0.b32.cont [12/16] 0.0, 128
    %57 = vxpose.xlu0.b32.cont [13/16] 0.0, 128
    %58 = vxpose.xlu0.b32.cont [14/16] 0.0, 128
    %59 = vxpose.xlu0.b32.cont [15/16] 0.0, 128
    %60 = vxpose.xlu0.b32.end [16/16] 0.0, 128
    %v61 = vpop.trf.xlu0
    %v62 = vpop.trf.xlu0
    %v63 = vpop.trf.xlu0
    %v64 = vpop.trf.xlu0
    %v65 = vpop.trf.xlu0
    %v66 = vpop.trf.xlu0
    %v67 = vpop.trf.xlu0
    %v68 = vpop.trf.xlu0
    %v69 = vpop.trf.xlu0
    %v70 = vpop.trf.xlu0
    %v71 = vpop.trf.xlu0
    %v72 = vpop.trf.xlu0
    %v73 = vpop.trf.xlu0
    %v74 = vpop.trf.xlu0
    %v75 = vpop.trf.xlu0
    %v76 = vpop.trf.xlu0
    %vm77 = vcmask 130048
    %78 = vst.msk [vmem:[%s2] sm:$0xff] %vm77, %v61
    %79 = vst.msk [vmem:[%s2 + $0x8] sm:$0xff] %vm77, %v62
    %80 = vst.msk [vmem:[%s2 + $0x10] sm:$0xff] %vm77, %v63
    %v81 = vld [vmem:[#allocation4] sm:$0xf]
    %82 = vxpose.xlu0.b32.start [1/16] %v81, 128
    %83 = vxpose.xlu0.b32.cont [2/16] 0.0, 128
    %84 = vxpose.xlu0.b32.cont [3/16] 0.0, 128
    %85 = vxpose.xlu0.b32.cont [4/16] 0.0, 128
    %86 = vxpose.xlu0.b32.cont [5/16] 0.0, 128
    %87 = vxpose.xlu0.b32.cont [6/16] 0.0, 128
    %88 = vxpose.xlu0.b32.cont [7/16] 0.0, 128
    %89 = vxpose.xlu0.b32.cont [8/16] 0.0, 128
    %90 = vxpose.xlu0.b32.cont [9/16] 0.0, 128
    %91 = vxpose.xlu0.b32.cont [10/16] 0.0, 128
    %92 = vxpose.xlu0.b32.cont [11/16] 0.0, 128
    %93 = vxpose.xlu0.b32.cont [12/16] 0.0, 128
    %94 = vxpose.xlu0.b32.cont [13/16] 0.0, 128
    %95 = vxpose.xlu0.b32.cont [14/16] 0.0, 128
    %96 = vxpose.xlu0.b32.cont [15/16] 0.0, 128
    %97 = vxpose.xlu0.b32.end [16/16] 0.0, 128
    %v98 = vpop.trf.xlu0
    %v99 = vpop.trf.xlu0
    %v100 = vpop.trf.xlu0
    %v101 = vpop.trf.xlu0
    %v102 = vpop.trf.xlu0
    %v103 = vpop.trf.xlu0
    %v104 = vpop.trf.xlu0
    %v105 = vpop.trf.xlu0
    %v106 = vpop.trf.xlu0
    %v107 = vpop.trf.xlu0
    %v108 = vpop.trf.xlu0
    %v109 = vpop.trf.xlu0
    %v110 = vpop.trf.xlu0
    %v111 = vpop.trf.xlu0
    %v112 = vpop.trf.xlu0
    %v113 = vpop.trf.xlu0
    %vm114 = vcmask 31744
    %115 = vst.msk [vmem:[%s3] sm:$0xff] %vm114, %v98
    %116 = vst.msk [vmem:[%s3 + $0x8] sm:$0xff] %vm114, %v99
    %117 = vst.msk [vmem:[%s3 + $0x10] sm:$0xff] %vm114, %v100
    %118 = vst.msk [vmem:[%s3 + $0x18] sm:$0xff] %vm114, %v101
    %119 = vst.msk [vmem:[%s3 + $0x20] sm:$0xff] %vm114, %v102
    %120 = vst.msk [vmem:[%s3 + $0x28] sm:$0xff] %vm114, %v103
    %121 = vst.msk [vmem:[%s3 + $0x30] sm:$0xff] %vm114, %v104
    %122 = vst.msk [vmem:[%s3 + $0x38] sm:$0xff] %vm114, %v105
    %123 = vst.msk [vmem:[%s3 + $0x40] sm:$0xff] %vm114, %v106
    %124 = vst.msk [vmem:[%s3 + $0x48] sm:$0xff] %vm114, %v107
    %125 = vst.msk [vmem:[%s3 + $0x50] sm:$0xff] %vm114, %v108
    %126 = vst.msk [vmem:[%s3 + $0x58] sm:$0xff] %vm114, %v109
    %127 = vst.msk [vmem:[%s3 + $0x60] sm:$0xff] %vm114, %v110
    %128 = vst.msk [vmem:[%s3 + $0x68] sm:$0xff] %vm114, %v111
    %129 = vst.msk [vmem:[%s3 + $0x70] sm:$0xff] %vm114, %v112
    %130 = vst.msk [vmem:[%s3 + $0x78] sm:$0xff] %vm114, %v113
    // Predicated region
    $region18: #{tpu_custom_call.1} parent=1 // pred_check
      _
    $region19: #{tpu_custom_call.1} parent=1 // pred_check_branch
      %132 = sbr.rel (0) target = $region21
    $region20: #{tpu_custom_call.1} parent=1 // pred_region
      _
    $region21: #{tpu_custom_call.1} parent=1 // pred_fallthru
      _
    // Predicated region
    $region22: #{tpu_custom_call.1} parent=1 // pred_check
      _
    $region23: #{tpu_custom_call.1} parent=1 // pred_check_branch
      %134 = sbr.rel (0) target = $region25
    $region24: #{tpu_custom_call.1} parent=1 // pred_region
      _
    $region25: #{tpu_custom_call.1} parent=1 // pred_fallthru
      _
    // Predicated region
    $region26: #{tpu_custom_call.1} parent=1 // pred_check
      _
    $region27: #{tpu_custom_call.1} parent=1 // pred_check_branch
      %136 = sbr.rel (0) target = $region29
    $region28: #{tpu_custom_call.1} parent=1 // pred_region
      _
    $region29: #{tpu_custom_call.1} parent=1 // pred_fallthru
      _
    // Predicated region
    $region30: #{tpu_custom_call.1} parent=1 // pred_check
      _
    $region31: #{tpu_custom_call.1} parent=1 // pred_check_branch
      %138 = sbr.rel (0) target = $region33
    $region32: #{tpu_custom_call.1} parent=1 // pred_region
      _
    $region33: #{tpu_custom_call.1} parent=1 // pred_fallthru
      _
    %139 = vsyncpa [#allocation3], 1
    %140 = vsyncpa [#allocation5], 1

</llo_original>
